<compile_context>
chip_gen: v7x
topology: tpu7x:2x2x1
jax: 0.10.0
libtpu: 0.0.40
codegen_flags: <defaults>
</compile_context>

<pallas_src>
import math

import jax
import jax.numpy as jnp
from jax.experimental import pallas as pl
from jax.experimental.pallas import tpu as pltpu


def _round_up(x: int, m: int) -> int:
    return ((x + m - 1) // m) * m


# ---------------------------------------------------------------------------
# Path A: small-vocab one-hot matmul (transposed layout: tokens on lanes).
# ---------------------------------------------------------------------------
def _make_onehot_kernel(nt_pad: int, scale: float, table_dtype):
    def kernel(ids_ref, table_t_ref, out_ref):
        # ids_ref:     (1, 1, bt) int32  -- lane-dense token ids for this block
        # table_t_ref: (d_model, nt_pad) -- padded, transposed table (resident)
        # out_ref:     (d_model, bt)     -- transposed output tile (lane-dense)
        ids = ids_ref[0]                                      # (1, bt) int32
        bt = ids.shape[-1]
        # onehot_T[v, t] = (v == ids[t]); int32 compare (v5e-friendly), one
        # cast to the matmul input dtype right at the dot.
        iota = jax.lax.broadcasted_iota(jnp.int32, (nt_pad, bt), 0)
        onehot_t = (iota == ids).astype(table_dtype)          # (nt_pad, bt)
        # Gather all bt rows with a single MXU matmul: (d, V) @ (V, bt).
        acc = jnp.dot(table_t_ref[...], onehot_t,
                      preferred_element_type=jnp.float32)
        # sqrt(d_model) applied exactly once; dense lane-major store.
        out_ref[...] = (acc * scale).astype(out_ref.dtype)
    return kernel


# ---------------------------------------------------------------------------
# Path B: large-vocab row gather (one DMA'd table row per grid step, selected
# by a scalar-prefetch / pl.Element data-dependent index_map).
# ---------------------------------------------------------------------------
def _make_gather_kernel(scale: float):
    def kernel(ids_smem_ref, row_ref, out_ref):
        # ids_smem_ref: (n,) int32 in SMEM (scalar prefetch; used by index_maps)
        # row_ref:      (1, d_model)    -- the gathered table row for this token
        # out_ref:      (1, 1, d_model)
        del ids_smem_ref
        out_ref[0] = (row_ref[...].astype(jnp.float32) * scale).astype(out_ref.dtype)
    return kernel


class PallasEmbeddings:
    """Pallas equivalent of Embeddings.forward: lut(x) * sqrt(d_model)."""

    def __init__(self, table, *, max_block_tokens: int = 512,
                 onehot_max_vocab: int = 1024, vocab_align: int = 256):
        self.table = table
        self.n_token, self.d_model = table.shape
        self.scale = math.sqrt(self.d_model)
        self.max_block_tokens = max_block_tokens

        nt_pad = _round_up(self.n_token, vocab_align)
        table_bytes = nt_pad * self.d_model * table.dtype.itemsize
        # One-hot fast path only while the double-buffered padded table and the
        # (nt_pad, block_tokens) one-hot intermediate stay small; beyond that
        # the HBM row-gather path is used (scales to real vocabularies).
        self.use_onehot = (nt_pad <= onehot_max_vocab) and (table_bytes <= (4 << 20))

        if self.use_onehot:
            self.nt_pad = nt_pad
            # One-time pad + transpose, hoisted out of the forward path.
            # Padded vocab rows are zero -> out-of-range ids gather zeros.
            self.table_t = (jnp.zeros((self.d_model, nt_pad), table.dtype)
                            .at[:, :self.n_token].set(table.T))

    # ---- path A: one-hot MXU gather ---------------------------------------
    def _onehot_lookup(self, ids_flat):
        n = ids_flat.shape[0]
        if n <= 128:
            # Tiny inputs: single block, no wasted rows beyond 8-row rounding
            # (splitting ~1 us of work across TCs only adds step overhead).
            bt = _round_up(n, 8)
        else:
            # >= 2 blocks (feeds both v7x TensorCores), lane-dense multiple of
            # 128 tokens per block, capped by the per-step VMEM budget.
            bt = min(self.max_block_tokens, _round_up(pl.cdiv(n, 2), 128))
        num_blocks = pl.cdiv(n, bt)
        n_pad = num_blocks * bt

        ids_pad = jnp.zeros((n_pad,), jnp.int32).at[:n].set(ids_flat)
        ids_blk = ids_pad.reshape(num_blocks, 1, bt)           # lane-dense ids

        kernel = _make_onehot_kernel(self.nt_pad, self.scale, self.table.dtype)
        out_t = pl.pallas_call(
            kernel,
            out_shape=jax.ShapeDtypeStruct((self.d_model, n_pad), self.table.dtype),
            grid_spec=pltpu.PrefetchScalarGridSpec(
                num_scalar_prefetch=0,
                grid=(num_blocks,),
                in_specs=[
                    # ids for this token block, lane-dense.
                    pl.BlockSpec((1, 1, bt), lambda i: (i, 0, 0)),
                    # Full padded+transposed table, resident every step.
                    pl.BlockSpec((self.d_model, self.nt_pad), lambda i: (0, 0)),
                ],
                out_specs=pl.BlockSpec((self.d_model, bt), lambda i: (0, i)),
            ),
            compiler_params=pltpu.CompilerParams(
                # Disjoint output blocks per step -> shardable across v7x TCs.
                dimension_semantics=("parallel",)),
        )(ids_blk, self.table_t)

        # Back to (n, d_model); trivial transpose at these widths (the lane-
        # dense transposed store is the win for d_model < 128).
        return out_t.T[:n]

    # ---- path B: HBM row gather --------------------------------------------
    def _gather_lookup(self, ids_flat):
        n = ids_flat.shape[0]
        d = self.d_model
        kernel = _make_gather_kernel(self.scale)
        out = pl.pallas_call(
            kernel,
            out_shape=jax.ShapeDtypeStruct((n, 1, d), self.table.dtype),
            grid_spec=pltpu.PrefetchScalarGridSpec(
                num_scalar_prefetch=1,          # ids land in SMEM before grid
                grid=(n,),
                in_specs=[
                    # Data-dependent row select: element offset = token id.
                    pl.BlockSpec((pl.Element(1), d),
                                 lambda i, ids_ref: (ids_ref[i], 0)),
                ],
                out_specs=pl.BlockSpec((1, 1, d), lambda i, ids_ref: (i, 0, 0)),
            ),
            compiler_params=pltpu.CompilerParams(
                dimension_semantics=("arbitrary",)),
        )(ids_flat, self.table)
        return out.reshape(n, d)

    def __call__(self, x_ids):
        batch, seq = x_ids.shape
        n = batch * seq
        ids_flat = x_ids.reshape(n).astype(jnp.int32)
        if self.use_onehot:
            out2d = self._onehot_lookup(ids_flat)
        else:
            out2d = self._gather_lookup(ids_flat)
        return out2d.reshape(batch, seq, self.d_model)


if __name__ == "__main__":
    # Deterministic parameter / input construction (synthetic, no checkpoint).
    n_token = 50
    d_model = 32
    batch = 2
    seq = 8

    key = jax.random.PRNGKey(0)
    k_table, k_ids, k_ids2 = jax.random.split(key, 3)

    # nn.Embedding default init ~ N(0, 1)
    table = jax.random.normal(k_table, (n_token, d_model), dtype=jnp.float32)
    x_ids = jax.random.randint(k_ids, (batch, seq), 0, n_token, dtype=jnp.int32)
    ref = table[x_ids] * math.sqrt(d_model)

    # --- Path A: one-hot fast path (small vocab), single-block tiny input ---
    emb = PallasEmbeddings(table)
    out = jax.block_until_ready(emb(x_ids))
    assert out.shape == (batch, seq, d_model)
    # One-hot products are exact in value; the small tolerance only covers the
    # MXU's default-precision f32 path (bf16 passes, rel err <= 2^-9) and is
    # still ~1000x tighter than any wrong-row error (O(sqrt(d_model)) ~ 5.7).
    assert bool(jnp.allclose(out, ref, atol=1e-3, rtol=5e-3)), "one-hot path mismatch"

    # --- Path A, multi-block variant: n > 128 -> 2 lane-dense blocks of 128 --
    x_ids2 = jax.random.randint(k_ids2, (batch, 128), 0, n_token, dtype=jnp.int32)
    out2 = jax.block_until_ready(emb(x_ids2))
    ref2 = table[x_ids2] * math.sqrt(d_model)
    assert out2.shape == (batch, 128, d_model)
    assert bool(jnp.allclose(out2, ref2, atol=1e-3, rtol=5e-3)), "multi-block mismatch"

    # --- Path B: HBM row gather (the large-vocab path, forced here) ----------
    emb_gather = PallasEmbeddings(table, onehot_max_vocab=0)
    assert not emb_gather.use_onehot
    out3 = jax.block_until_ready(emb_gather(x_ids))
    assert out3.shape == (batch, seq, d_model)
    # Pure row copy + scale: should match the reference essentially exactly.
    assert bool(jnp.allclose(out3, ref, atol=1e-6, rtol=1e-6)), "gather path mismatch"

    print("KERNEL_OK")
</pallas_src>

<mosaic_0001>
module attributes {stable_mosaic.version = 11 : i64} {
  func.func @kernel(%arg0: i32, %arg1: memref<1x1x16xi32, #tpu.memory_space<vmem>>, %arg2: memref<32x256xf32, #tpu.memory_space<vmem>>, %arg3: memref<32x16xf32, #tpu.memory_space<vmem>>) attributes {dimension_semantics = [#tpu.dimension_semantics<parallel>], iteration_bounds = array<i64: 1>, scalar_prefetch = 0 : i64, scratch_operands = 0 : i64, tpu.core_type = #tpu.core_type<tc>, window_params = [{transform_indices = @transform_0, window_bounds = array<i64: 1, 1, 16>}, {pipeline_mode = #tpu.pipeline_mode<synchronous>, transform_indices = @transform_1, window_bounds = array<i64: 32, 256>}, {transform_indices = @transform_2, window_bounds = array<i64: 32, 16>}]} {
    %c0 = arith.constant 0 : index
    %c0_0 = arith.constant 0 : index
    %c0_1 = arith.constant 0 : index
    %0 = vector.load %arg1[%c0, %c0_0, %c0_1] : memref<1x1x16xi32, #tpu.memory_space<vmem>>, vector<1x1x16xi32>
    %1 = vector.shape_cast %0 : vector<1x1x16xi32> to vector<1x16xi32>
    %2 = tpu.iota {dimensions = array<i32: 0>} : vector<256x16xi32>
    %3 = vector.broadcast %1 : vector<1x16xi32> to vector<256x16xi32>
    %4 = arith.cmpi eq, %2, %3 : vector<256x16xi32>
    %5 = arith.extui %4 : vector<256x16xi1> to vector<256x16xi32>
    %6 = arith.sitofp %5 : vector<256x16xi32> to vector<256x16xf32>
    %c0_2 = arith.constant 0 : index
    %c0_3 = arith.constant 0 : index
    %7 = vector.load %arg2[%c0_2, %c0_3] : memref<32x256xf32, #tpu.memory_space<vmem>>, vector<32x256xf32>
    %cst = arith.constant dense<0.000000e+00> : vector<32x16xf32>
    %8 = tpu.matmul %7, %6, %cst {dimension_numbers = #tpu.dot_dimension_numbers<[1], [0], [0], [1], [0, 0, 1, 1], [], []>} : vector<32x256xf32>, vector<256x16xf32>, vector<32x16xf32> -> vector<32x16xf32>
    %cst_4 = arith.constant 5.65685415 : f32
    %9 = vector.broadcast %cst_4 : f32 to vector<32x16xf32>
    %10 = arith.mulf %8, %9 : vector<32x16xf32>
    %c0_5 = arith.constant 0 : index
    %c0_6 = arith.constant 0 : index
    %11 = vector.load %arg3[%c0_5, %c0_6] : memref<32x16xf32, #tpu.memory_space<vmem>>, vector<32x16xf32>
    tpu.vector_store %arg3[%c0_5, %c0_6], %10 {strides = array<i32>} : memref<32x16xf32, #tpu.memory_space<vmem>>, vector<32x16xf32>,
    return
  }
  func.func @transform_0(%arg0: i32) -> (i32, i32, i32) {
    %c0_i32 = arith.constant 0 : i32
    %c0_i32_0 = arith.constant 0 : i32
    %c0_i32_1 = arith.constant 0 : i32
    return %arg0, %c0_i32, %c0_i32_0 : i32, i32, i32
  }
  func.func @transform_1(%arg0: i32) -> (i32, i32) {
    %c0_i32 = arith.constant 0 : i32
    %c0_i32_0 = arith.constant 0 : i32
    %c0_i32_1 = arith.constant 0 : i32
    return %c0_i32, %c0_i32_0 : i32, i32
  }
  func.func @transform_2(%arg0: i32) -> (i32, i32) {
    %c0_i32 = arith.constant 0 : i32
    %c0_i32_0 = arith.constant 0 : i32
    return %c0_i32, %arg0 : i32, i32
  }
}

</mosaic_0001>

<llo_original>
// kernel: tpu_custom_call.1
$region0: #{tpu_custom_call.1}
  #allocation0 [shape = 'u32[]', space=smem, size = 0x4, offset = 0x4, fixed_abs, tag = 'smem constant byte address 0x4 - core index']
  #allocation1 [shape = 'u32[144,128]{1,0:T(1,128)}', space=vmem, size = 0x12000, scoped, tag = 'internal scratch']
  %s0 = inlined_call_operand.hbm [shape: s32[1,1,16], index: 0, kind: input, shape index: {}]
  %s1 = inlined_call_operand.hbm [shape: f32[32,256], index: 1, kind: input, shape index: {}]
  %s2 = inlined_call_operand.vmem [shape: f32[32,16], index: 2, kind: output, shape index: {}]
  %s3 = sld [smem:[#allocation0]]
  $region26: #{tpu_custom_call.1} parent=0
    _
  %s5 = ssub.s32 1, %s3
  %s6 = scalar_select 0, %s5, %s3
  $region1: #{tpu_custom_call.1} parent=0
    #allocation2 [shape = 'u8[512]{0}', space=vmem, size = 0x400, scoped, tag = 'input window, operand 0, single buffered']
    #allocation3 [shape = 's32[1]{0}', space=sflag, size = 0x4, scoped, tag = 'scoped memory for tpu_custom_call.1']
    #allocation4 [shape = 'u8[32768]{0}', space=vmem, size = 0x8000, scoped, tag = 'input window, operand 1, single buffered']
    #allocation5 [shape = 's32[1]{0}', space=sflag, size = 0x4, scoped, tag = 'scoped memory for tpu_custom_call.1']
    %7 = vsyncpa [#allocation3], 0
    %8 = vsyncpa [#allocation5], 0
    // Predicated region
    $region2: #{tpu_custom_call.1} parent=1 // pred_check
      _
    $region3: #{tpu_custom_call.1} parent=1 // pred_check_branch
      %10 = sbr.rel (0) target = $region5
    $region4: #{tpu_custom_call.1} parent=1 // pred_region
      %s12 = ssub.s32 16, 16
      %13 = vsyncadd [#allocation3], %s12
      %s15 = sshll.u32 [#allocation2], 4
      %s16 = int_to_ptr.vmem [resolvable:$true] %s15
      %18 = dma.hbm_to_vmem [thread:$0]  %s0, 16, %s16, [#allocation3]
    $region5: #{tpu_custom_call.1} parent=1 // pred_fallthru
      _
    // Predicated region
    $region6: #{tpu_custom_call.1} parent=1 // pred_check
      _
    $region7: #{tpu_custom_call.1} parent=1 // pred_check_branch
      %20 = sbr.rel (0) target = $region9
    $region8: #{tpu_custom_call.1} parent=1 // pred_region
      %s22 = ssub.s32 1024, 1024
      %23 = vsyncadd [#allocation5], %s22
      %s24 = sshll.u32 [#allocation4], 4
      %s25 = int_to_ptr.vmem [resolvable:$true] %s24
      %30 = dma.hbm_to_vmem [thread:$0]  %s1, 1024, %s25, [#allocation5], 256, 256, 16
    $region9: #{tpu_custom_call.1} parent=1 // pred_fallthru
      _
    // Predicated region
    $region10: #{tpu_custom_call.1} parent=1 // pred_check
      _
    $region11: #{tpu_custom_call.1} parent=1 // pred_check_branch
      %32 = sbr.rel (0) target = $region13
    $region12: #{tpu_custom_call.1} parent=1 // pred_region
      %33 = dma.done [#allocation3], 16
    $region13: #{tpu_custom_call.1} parent=1 // pred_fallthru
      _
    // Predicated region
    $region14: #{tpu_custom_call.1} parent=1 // pred_check
      _
    $region15: #{tpu_custom_call.1} parent=1 // pred_check_branch
      %35 = sbr.rel (0) target = $region17
    $region16: #{tpu_custom_call.1} parent=1 // pred_region
      %36 = dma.done [#allocation5], 1024
    $region17: #{tpu_custom_call.1} parent=1 // pred_fallthru
      _
    %v37 = vld [vmem:[#allocation2] sm:$0x1]
    %v38 = vlaneseq
    %v39 = vshrl.u32 %v38, 7
    %v40 = vadd.s32 %v39, 8
    %v41 = vadd.s32 %v39, 16
    %v42 = vadd.s32 %v39, 24
    %v43 = vadd.s32 %v39, 32
    %v44 = vadd.s32 %v39, 40
    %v45 = vadd.s32 %v39, 48
    %v46 = vadd.s32 %v39, 56
    %v47 = vadd.s32 %v39, 64
    %v48 = vadd.s32 %v39, 72
    %v49 = vadd.s32 %v39, 80
    %v50 = vadd.s32 %v39, 88
    %v51 = vadd.s32 %v39, 96
    %v52 = vadd.s32 %v39, 104
    %v53 = vadd.s32 %v39, 112
    %v54 = vadd.s32 %v39, 120
    %v55 = vadd.s32 %v39, 128
    %v56 = vadd.s32 %v39, 136
    %v57 = vadd.s32 %v39, 144
    %v58 = vadd.s32 %v39, 152
    %v59 = vadd.s32 %v39, 160
    %v60 = vadd.s32 %v39, 168
    %v61 = vadd.s32 %v39, 176
    %v62 = vadd.s32 %v39, 184
    %v63 = vadd.s32 %v39, 192
    %v64 = vadd.s32 %v39, 200
    %v65 = vadd.s32 %v39, 208
    %v66 = vadd.s32 %v39, 216
    %v67 = vadd.s32 %v39, 224
    %v68 = vadd.s32 %v39, 232
    %v69 = vadd.s32 %v39, 240
    %v70 = vadd.s32 %v39, 248
    %v71 = vlaneseq
    %v72 = vshrl.u32 %v71, 7
    %v73 = vsub.s32 0, %v72
    %v74 = vrot.slane %v37, %v73
    %vm75 = vcmp.eq.s32.totalorder %v39, %v74
    %vm76 = vcmp.eq.s32.totalorder %v40, %v74
    %vm77 = vcmp.eq.s32.totalorder %v41, %v74
    %vm78 = vcmp.eq.s32.totalorder %v42, %v74
    %vm79 = vcmp.eq.s32.totalorder %v43, %v74
    %vm80 = vcmp.eq.s32.totalorder %v44, %v74
    %vm81 = vcmp.eq.s32.totalorder %v45, %v74
    %vm82 = vcmp.eq.s32.totalorder %v46, %v74
    %vm83 = vcmp.eq.s32.totalorder %v47, %v74
    %vm84 = vcmp.eq.s32.totalorder %v48, %v74
    %vm85 = vcmp.eq.s32.totalorder %v49, %v74
    %vm86 = vcmp.eq.s32.totalorder %v50, %v74
    %vm87 = vcmp.eq.s32.totalorder %v51, %v74
    %vm88 = vcmp.eq.s32.totalorder %v52, %v74
    %vm89 = vcmp.eq.s32.totalorder %v53, %v74
    %vm90 = vcmp.eq.s32.totalorder %v54, %v74
    %vm91 = vcmp.eq.s32.totalorder %v55, %v74
    %vm92 = vcmp.eq.s32.totalorder %v56, %v74
    %vm93 = vcmp.eq.s32.totalorder %v57, %v74
    %vm94 = vcmp.eq.s32.totalorder %v58, %v74
    %vm95 = vcmp.eq.s32.totalorder %v59, %v74
    %vm96 = vcmp.eq.s32.totalorder %v60, %v74
    %vm97 = vcmp.eq.s32.totalorder %v61, %v74
    %vm98 = vcmp.eq.s32.totalorder %v62, %v74
    %vm99 = vcmp.eq.s32.totalorder %v63, %v74
    %vm100 = vcmp.eq.s32.totalorder %v64, %v74
    %vm101 = vcmp.eq.s32.totalorder %v65, %v74
    %vm102 = vcmp.eq.s32.totalorder %v66, %v74
    %vm103 = vcmp.eq.s32.totalorder %v67, %v74
    %vm104 = vcmp.eq.s32.totalorder %v68, %v74
    %vm105 = vcmp.eq.s32.totalorder %v69, %v74
    %vm106 = vcmp.eq.s32.totalorder %v70, %v74
    %v107 = vsel %vm75, 1, 0
    %v108 = vsel %vm76, 1, 0
    %v109 = vsel %vm77, 1, 0
    %v110 = vsel %vm78, 1, 0
    %v111 = vsel %vm79, 1, 0
    %v112 = vsel %vm80, 1, 0
    %v113 = vsel %vm81, 1, 0
    %v114 = vsel %vm82, 1, 0
    %v115 = vsel %vm83, 1, 0
    %v116 = vsel %vm84, 1, 0
    %v117 = vsel %vm85, 1, 0
    %v118 = vsel %vm86, 1, 0
    %v119 = vsel %vm87, 1, 0
    %v120 = vsel %vm88, 1, 0
    %v121 = vsel %vm89, 1, 0
    %v122 = vsel %vm90, 1, 0
    %v123 = vsel %vm91, 1, 0
    %v124 = vsel %vm92, 1, 0
    %v125 = vsel %vm93, 1, 0
    %v126 = vsel %vm94, 1, 0
    %v127 = vsel %vm95, 1, 0
    %v128 = vsel %vm96, 1, 0
    %v129 = vsel %vm97, 1, 0
    %v130 = vsel %vm98, 1, 0
    %v131 = vsel %vm99, 1, 0
    %v132 = vsel %vm100, 1, 0
    %v133 = vsel %vm101, 1, 0
    %v134 = vsel %vm102, 1, 0
    %v135 = vsel %vm103, 1, 0
    %v136 = vsel %vm104, 1, 0
    %v137 = vsel %vm105, 1, 0
    %v138 = vsel %vm106, 1, 0
    %v139 = vcvt.s32.f32 %v107
    %v140 = vcvt.s32.f32 %v108
    %v141 = vcvt.s32.f32 %v109
    %v142 = vcvt.s32.f32 %v110
    %v143 = vcvt.s32.f32 %v111
    %v144 = vcvt.s32.f32 %v112
    %v145 = vcvt.s32.f32 %v113
    %v146 = vcvt.s32.f32 %v114
    %v147 = vcvt.s32.f32 %v115
    %v148 = vcvt.s32.f32 %v116
    %v149 = vcvt.s32.f32 %v117
    %v150 = vcvt.s32.f32 %v118
    %v151 = vcvt.s32.f32 %v119
    %v152 = vcvt.s32.f32 %v120
    %v153 = vcvt.s32.f32 %v121
    %v154 = vcvt.s32.f32 %v122
    %v155 = vcvt.s32.f32 %v123
    %v156 = vcvt.s32.f32 %v124
    %v157 = vcvt.s32.f32 %v125
    %v158 = vcvt.s32.f32 %v126
    %v159 = vcvt.s32.f32 %v127
    %v160 = vcvt.s32.f32 %v128
    %v161 = vcvt.s32.f32 %v129
    %v162 = vcvt.s32.f32 %v130
    %v163 = vcvt.s32.f32 %v131
    %v164 = vcvt.s32.f32 %v132
    %v165 = vcvt.s32.f32 %v133
    %v166 = vcvt.s32.f32 %v134
    %v167 = vcvt.s32.f32 %v135
    %v168 = vcvt.s32.f32 %v136
    %v169 = vcvt.s32.f32 %v137
    %v170 = vcvt.s32.f32 %v138
    %v171 = vld [vmem:[#allocation4] sm:$0xff]
    %v172 = vld [vmem:[#allocation4 + $0x8] sm:$0xff]
    %v173 = vld [vmem:[#allocation4 + $0x10] sm:$0xff]
    %v174 = vld [vmem:[#allocation4 + $0x18] sm:$0xff]
    %v175 = vld [vmem:[#allocation4 + $0x20] sm:$0xff]
    %v176 = vld [vmem:[#allocation4 + $0x28] sm:$0xff]
    %v177 = vld [vmem:[#allocation4 + $0x30] sm:$0xff]
    %v178 = vld [vmem:[#allocation4 + $0x38] sm:$0xff]
    %179 = vmatprep.subr.mxu0 0.0
    %180 = vmatpush1.msra.mxu0 %v139
    %181 = vmatprep.subr.mxu0 0.0
    %182 = vmatpush1.msra.mxu0 %v140
    %183 = vmatprep.subr.mxu0 0.0
    %184 = vmatpush1.msra.mxu0 %v141
    %185 = vmatprep.subr.mxu0 0.0
    %186 = vmatpush1.msra.mxu0 %v142
    %187 = vmatprep.subr.mxu0 0.0
    %188 = vmatpush1.msra.mxu0 %v143
    %189 = vmatprep.subr.mxu0 0.0
    %190 = vmatpush1.msra.mxu0 %v144
    %191 = vmatprep.subr.mxu0 0.0
    %192 = vmatpush1.msra.mxu0 %v145
    %193 = vmatprep.subr.mxu0 0.0
    %194 = vmatpush1.msra.mxu0 %v146
    %195 = vmatprep.subr.mxu0 0.0
    %196 = vmatpush1.msra.mxu0 %v147
    %197 = vmatprep.subr.mxu0 0.0
    %198 = vmatpush1.msra.mxu0 %v148
    %199 = vmatprep.subr.mxu0 0.0
    %200 = vmatpush1.msra.mxu0 %v149
    %201 = vmatprep.subr.mxu0 0.0
    %202 = vmatpush1.msra.mxu0 %v150
    %203 = vmatprep.subr.mxu0 0.0
    %204 = vmatpush1.msra.mxu0 %v151
    %205 = vmatprep.subr.mxu0 0.0
    %206 = vmatpush1.msra.mxu0 %v152
    %207 = vmatprep.subr.mxu0 0.0
    %208 = vmatpush1.msra.mxu0 %v153
    %209 = vmatprep.subr.mxu0 0.0
    %210 = vmatpush1.msra.mxu0 %v154
    %211 = vmatprep.subr.mxu0 0.0
    %212 = vmatpush1.msra.mxu0 %v155
    %213 = vmatprep.subr.mxu0 0.0
    %214 = vmatpush1.msra.mxu0 %v156
    %215 = vmatprep.subr.mxu0 0.0
    %216 = vmatpush1.msra.mxu0 %v157
    %217 = vmatprep.subr.mxu0 0.0
    %218 = vmatpush1.msra.mxu0 %v158
    %219 = vmatprep.subr.mxu0 0.0
    %220 = vmatpush1.msra.mxu0 %v159
    %221 = vmatprep.subr.mxu0 0.0
    %222 = vmatpush1.msra.mxu0 %v160
    %223 = vmatprep.subr.mxu0 0.0
    %224 = vmatpush1.msra.mxu0 %v161
    %225 = vmatprep.subr.mxu0 0.0
    %226 = vmatpush1.msra.mxu0 %v162
    %227 = vmatprep.subr.mxu0 0.0
    %228 = vmatpush1.msra.mxu0 %v163
    %229 = vmatprep.subr.mxu0 0.0
    %230 = vmatpush1.msra.mxu0 %v164
    %231 = vmatprep.subr.mxu0 0.0
    %232 = vmatpush1.msra.mxu0 %v165
    %233 = vmatprep.subr.mxu0 0.0
    %234 = vmatpush1.msra.mxu0 %v166
    %235 = vmatprep.subr.mxu0 0.0
    %236 = vmatpush1.msra.mxu0 %v167
    %237 = vmatprep.subr.mxu0 0.0
    %238 = vmatpush1.msra.mxu0 %v168
    %239 = vmatprep.subr.mxu0 0.0
    %240 = vmatpush1.msra.mxu0 %v169
    %241 = vmatprep.subr.mxu0 0.0
    %242 = vmatpush1.msra.mxu0 %v170
    %243 = vmatprep.mubr.f32.mxu0 %v172
    %244 = vmatmul.mubr.f32.gmra.mrb[0].mxu0 %v171
    %v245 = vpop.f32.mrb[0].mxu0
    %v246 = vadd.f32 0.0, %v245
    %v247 = vpop.f32.mrb[0].mxu0
    %248 = vmatprep.mubr.f32.mxu0 %v174
    %249 = vmatmul.mubr.f32.gmra.mrb[0].mxu0 %v173
    %v250 = vpop.f32.mrb[0].mxu0
    %v251 = vadd.f32 0.0, %v250
    %v252 = vpop.f32.mrb[0].mxu0
    %253 = vmatprep.mubr.f32.mxu0 %v176
    %254 = vmatmul.mubr.f32.gmra.mrb[0].mxu0 %v175
    %v255 = vpop.f32.mrb[0].mxu0
    %v256 = vadd.f32 0.0, %v255
    %v257 = vpop.f32.mrb[0].mxu0
    %258 = vmatprep.mubr.f32.mxu0 %v178
    %259 = vmatmul.mubr.f32.gmra.mrb[0].mxu0 %v177
    %v260 = vpop.f32.mrb[0].mxu0
    %v261 = vadd.f32 0.0, %v260
    %v262 = vpop.f32.mrb[0].mxu0
    %263 = vdwg.mxu0
    %v264 = vmul.f32 %v246, 5.656854
    %v265 = vmul.f32 %v251, 5.656854
    %v266 = vmul.f32 %v256, 5.656854
    %v267 = vmul.f32 %v261, 5.656854
    %vm268 = vcmask 130048
    %269 = vst.msk [vmem:[%s2] sm:$0xff] %vm268, %v264
    %270 = vst.msk [vmem:[%s2 + $0x8] sm:$0xff] %vm268, %v265
    %271 = vst.msk [vmem:[%s2 + $0x10] sm:$0xff] %vm268, %v266
    %272 = vst.msk [vmem:[%s2 + $0x18] sm:$0xff] %vm268, %v267
    // Predicated region
    $region18: #{tpu_custom_call.1} parent=1 // pred_check
      _
    $region19: #{tpu_custom_call.1} parent=1 // pred_check_branch
      %274 = sbr.rel (0) target = $region21
    $region20: #{tpu_custom_call.1} parent=1 // pred_region
      _
    $region21: #{tpu_custom_call.1} parent=1 // pred_fallthru
      _
    // Predicated region
    $region22: #{tpu_custom_call.1} parent=1 // pred_check
      _
    $region23: #{tpu_custom_call.1} parent=1 // pred_check_branch
      %276 = sbr.rel (0) target = $region25
    $region24: #{tpu_custom_call.1} parent=1 // pred_region
      _
    $region25: #{tpu_custom_call.1} parent=1 // pred_fallthru
      _
    %277 = vsyncpa [#allocation3], 1
    %278 = vsyncpa [#allocation5], 1

</llo_original>
